<compile_context>
chip_gen: v5e
topology: v5e:2x2
jax: 0.10.0
libtpu: 0.0.40
codegen_flags: <defaults>
</compile_context>

<pallas_src>
import math

import jax
import jax.numpy as jnp
from jax.experimental import pallas as pl
from jax.experimental.pallas import tpu as pltpu


def _sinusoidal_pos_emb_kernel(x_ref, freqs_ref, sinmask_ref, out_ref):
    """x_ref: (TB, 1) f32; freqs_ref/sinmask_ref: (1, dim) f32; out_ref: (TB, dim) f32.

    freqs_ref holds [f_0..f_{h-1}, f_0..f_{h-1}] (duplicated half table), so
    arg = x * freqs is the full-width phase argument.  sinmask is 1.0 on the
    first half_dim lanes and 0.0 on the rest -> one full-width store, no concat.
    """
    arg = x_ref[...] * freqs_ref[...]                       # (TB, 1)*(1, dim) -> (TB, dim)
    out_ref[...] = jnp.where(sinmask_ref[...] != 0.0, jnp.sin(arg), jnp.cos(arg))


def _pick_block_rows(b):
    """Largest convenient row tile dividing b (keeps (8,128) rule satisfied)."""
    for tb in (1024, 512, 256, 128, 64, 32, 16, 8):
        if b >= tb and b % tb == 0:
            return tb
    return b  # small / awkward batch: single block (block_shape == array shape)


def sinusoidal_pos_emb(x, dim, *, block_rows=None):
    """x: (B,) float timesteps -> (B, dim) f32, layout [sin(x*f_j) | cos(x*f_j)]."""
    assert dim % 2 == 0 and dim >= 4, "dim must be even and >= 4"
    half = dim // 2
    b = x.shape[0]
    x2d = x.astype(jnp.float32).reshape(b, 1)

    # Static tables, computed once outside the kernel (trace-time).  The half
    # table is built with the exact same jnp ops as the PyTorch/JAX reference
    # so the kernel's arguments are bit-identical to the reference's.
    scale = math.log(10000.0) / (half - 1)
    freqs_half = jnp.exp(jnp.arange(half, dtype=jnp.float32) * -scale)        # (half,)
    freqs_full = jnp.concatenate([freqs_half, freqs_half])[None, :]           # (1, dim)
    sin_mask = jnp.concatenate(
        [jnp.ones((half,), jnp.float32), jnp.zeros((half,), jnp.float32)]
    )[None, :]                                                                # (1, dim)

    tb = block_rows if block_rows is not None else _pick_block_rows(b)
    grid = (b // tb,)

    return pl.pallas_call(
        _sinusoidal_pos_emb_kernel,
        out_shape=jax.ShapeDtypeStruct((b, dim), jnp.float32),
        grid=grid,
        in_specs=[
            pl.BlockSpec((tb, 1), lambda i: (i, 0)),      # timesteps, tiled over batch
            pl.BlockSpec((1, dim), lambda i: (0, 0)),     # static freq table (replicated)
            pl.BlockSpec((1, dim), lambda i: (0, 0)),     # static sin/cos mask (replicated)
        ],
        out_specs=pl.BlockSpec((tb, dim), lambda i: (i, 0)),
        compiler_params=pltpu.CompilerParams(
            dimension_semantics=("parallel",),            # shard batch across TCs (v7x)
        ),
    )(x2d, freqs_full, sin_mask)


def _reference(x, dim):
    """Pure-JAX reference mirroring the PyTorch forward exactly."""
    half_dim = dim // 2
    emb = math.log(10000.0) / (half_dim - 1)
    emb = jnp.exp(jnp.arange(half_dim, dtype=jnp.float32) * -emb)
    emb = x.astype(jnp.float32)[:, None] * emb[None, :]
    return jnp.concatenate([jnp.sin(emb), jnp.cos(emb)], axis=-1)


if __name__ == "__main__":
    dim = 32    # SinusoidalPositionEmbeddings(dim=32)
    batch = 8   # number of diffusion timesteps

    key = jax.random.PRNGKey(0)
    # Diffusion timesteps: random floats in [0, 1000)
    x = jax.random.uniform(key, (batch,), dtype=jnp.float32, minval=0.0, maxval=1000.0)

    out = sinusoidal_pos_emb(x, dim)
    out = jax.block_until_ready(out)

    ref = _reference(x, dim)
    assert out.shape == (batch, dim), out.shape
    assert jnp.allclose(out, ref, atol=1e-5, rtol=1e-5), "mismatch vs reference"

    print("KERNEL_OK")
</pallas_src>

<mosaic_0001>
module attributes {stable_mosaic.version = 11 : i64} {
  func.func @_sinusoidal_pos_emb_kernel(%arg0: i32, %arg1: memref<8x1xf32, #tpu.memory_space<vmem>>, %arg2: memref<1x32xf32, #tpu.memory_space<vmem>>, %arg3: memref<1x32xf32, #tpu.memory_space<vmem>>, %arg4: memref<8x32xf32, #tpu.memory_space<vmem>>) attributes {dimension_semantics = [#tpu.dimension_semantics<parallel>], iteration_bounds = array<i64: 1>, scalar_prefetch = 0 : i64, scratch_operands = 0 : i64, tpu.core_type = #tpu.core_type<tc>, window_params = [{transform_indices = @transform_0, window_bounds = array<i64: 8, 1>}, {pipeline_mode = #tpu.pipeline_mode<synchronous>, transform_indices = @transform_1, window_bounds = array<i64: 1, 32>}, {pipeline_mode = #tpu.pipeline_mode<synchronous>, transform_indices = @transform_2, window_bounds = array<i64: 1, 32>}, {transform_indices = @transform_3, window_bounds = array<i64: 8, 32>}]} {
    %c0 = arith.constant 0 : index
    %c0_0 = arith.constant 0 : index
    %0 = vector.load %arg1[%c0, %c0_0] : memref<8x1xf32, #tpu.memory_space<vmem>>, vector<8x1xf32>
    %c0_1 = arith.constant 0 : index
    %c0_2 = arith.constant 0 : index
    %1 = vector.load %arg2[%c0_1, %c0_2] : memref<1x32xf32, #tpu.memory_space<vmem>>, vector<1x32xf32>
    %2 = vector.broadcast %0 : vector<8x1xf32> to vector<8x32xf32>
    %3 = vector.broadcast %1 : vector<1x32xf32> to vector<8x32xf32>
    %4 = arith.mulf %2, %3 : vector<8x32xf32>
    %c0_3 = arith.constant 0 : index
    %c0_4 = arith.constant 0 : index
    %5 = vector.load %arg3[%c0_3, %c0_4] : memref<1x32xf32, #tpu.memory_space<vmem>>, vector<1x32xf32>
    %cst = arith.constant 0.000000e+00 : f32
    %6 = vector.broadcast %cst : f32 to vector<1x32xf32>
    %7 = arith.cmpf one, %5, %6 : vector<1x32xf32>
    %8 = math.sin %4 : vector<8x32xf32>
    %9 = math.cos %4 : vector<8x32xf32>
    %10 = vector.shape_cast %7 : vector<1x32xi1> to vector<1x32xi1>
    %11 = vector.broadcast %10 : vector<1x32xi1> to vector<8x32xi1>
    %12 = arith.select %11, %8, %9 : vector<8x32xi1>, vector<8x32xf32>
    %c0_5 = arith.constant 0 : index
    %c0_6 = arith.constant 0 : index
    %13 = vector.load %arg4[%c0_5, %c0_6] : memref<8x32xf32, #tpu.memory_space<vmem>>, vector<8x32xf32>
    tpu.vector_store %arg4[%c0_5, %c0_6], %12 {strides = array<i32>} : memref<8x32xf32, #tpu.memory_space<vmem>>, vector<8x32xf32>,
    return
  }
  func.func @transform_0(%arg0: i32) -> (i32, i32) {
    %c0_i32 = arith.constant 0 : i32
    %c0_i32_0 = arith.constant 0 : i32
    return %arg0, %c0_i32 : i32, i32
  }
  func.func @transform_1(%arg0: i32) -> (i32, i32) {
    %c0_i32 = arith.constant 0 : i32
    %c0_i32_0 = arith.constant 0 : i32
    %c0_i32_1 = arith.constant 0 : i32
    return %c0_i32, %c0_i32_0 : i32, i32
  }
  func.func @transform_2(%arg0: i32) -> (i32, i32) {
    %c0_i32 = arith.constant 0 : i32
    %c0_i32_0 = arith.constant 0 : i32
    %c0_i32_1 = arith.constant 0 : i32
    return %c0_i32, %c0_i32_0 : i32, i32
  }
  func.func @transform_3(%arg0: i32) -> (i32, i32) {
    %c0_i32 = arith.constant 0 : i32
    %c0_i32_0 = arith.constant 0 : i32
    return %arg0, %c0_i32 : i32, i32
  }
}

</mosaic_0001>

<llo_original>
// kernel: tpu_custom_call.1
$region0: #{tpu_custom_call.1}
  #allocation0 [shape = 'u32[]', space=smem, size = 0x4, offset = 0x4, fixed_abs, tag = 'smem constant byte address 0x4 - core index']
  #allocation1 [shape = 'u32[72,128]{1,0:T(1,128)}', space=vmem, size = 0x9000, scoped, tag = 'internal scratch']
  %s0 = inlined_call_operand.vmem [shape: f32[8,1], index: 0, kind: input, shape index: {}]
  %s1 = inlined_call_operand.vmem [shape: f32[1,32], index: 1, kind: input, shape index: {}]
  %s2 = inlined_call_operand.vmem [shape: f32[1,32], index: 2, kind: input, shape index: {}]
  %s3 = inlined_call_operand.hbm [shape: f32[8,32], index: 3, kind: output, shape index: {}]
  %s4 = sld [smem:[#allocation0]]
  $region22: #{tpu_custom_call.1} parent=0
    _
  %s6 = ssub.s32 1, %s4
  %s7 = scalar_select 0, %s6, %s4
  $region1: #{tpu_custom_call.1} parent=0
    #allocation2 [shape = 'u8[4096]{0}', space=vmem, size = 0x1000, scoped, tag = 'output window, operand 0, single buffered']
    #allocation3 [shape = 's32[1]{0}', space=sflag, size = 0x4, scoped, tag = 'scoped memory for tpu_custom_call.1']
    %8 = vsyncpa [#allocation3], 0
    // Predicated region
    $region2: #{tpu_custom_call.1} parent=1 // pred_check
      _
    $region3: #{tpu_custom_call.1} parent=1 // pred_check_branch
      %10 = sbr.rel (0) target = $region5
    $region4: #{tpu_custom_call.1} parent=1 // pred_region
      _
    $region5: #{tpu_custom_call.1} parent=1 // pred_fallthru
      _
    // Predicated region
    $region6: #{tpu_custom_call.1} parent=1 // pred_check
      _
    $region7: #{tpu_custom_call.1} parent=1 // pred_check_branch
      %12 = sbr.rel (0) target = $region9
    $region8: #{tpu_custom_call.1} parent=1 // pred_region
      _
    $region9: #{tpu_custom_call.1} parent=1 // pred_fallthru
      _
    // Predicated region
    $region10: #{tpu_custom_call.1} parent=1 // pred_check
      _
    $region11: #{tpu_custom_call.1} parent=1 // pred_check_branch
      %14 = sbr.rel (0) target = $region13
    $region12: #{tpu_custom_call.1} parent=1 // pred_region
      _
    $region13: #{tpu_custom_call.1} parent=1 // pred_fallthru
      _
    %v15 = vld [vmem:[%s0] sm:$0xff]
    %v16 = vld [vmem:[%s1] sm:$0x1]
    %18 = vset.pattern.permute.xlu0 0
    %19 = vperm.xlu0 %18, %v15
    %v20 = vpop.permute.xlu0 %19
    %v23 = vperm.slane %v16, 0
    %v25 = vmul.f32 %v20, %v23
    %v26 = vld [vmem:[%s2] sm:$0x1]
    %vm27 = vcmp.ne.f32.partialorder %v26, 0.0
    %v28 = vand.u32 2147483647, %v25
    %vm29 = vcmp.le.f32.partialorder %v28, 0.7853982
    %vm30 = vcmp.lt.s32.totalorder %v25, 0
    %v31 = vand.u32 %v25, 2139095040
    %v32 = vshrl.u32 %v31, 23
    %v33 = vsub.s32 %v32, 127
    %v34 = vand.u32 2147483647, %v25
    %v35 = vand.u32 %v34, 8388607
    %v36 = vor.u32 %v35, 8388608
    %v37 = vsub.s32 0, %v36
    %v38 = vadd.s32 %v33, 1
    %vm39 = vcmp.gt.s32.totalorder %v38, 0
    %v40 = vsel %vm39, %v38, 0
    %v41 = vshrl.u32 %v40, 5
    %v42 = vand.u32 %v40, 31
    %v43 = vsub.s32 32, %v42
    %v44 = vshrl.u32 683565275, %v43
    %v45 = vshll.u32 683565275, %v42
    %v46 = vshrl.u32 2475754826, %v43
    %v47 = vor.u32 %v45, %v46
    %v48 = vshll.u32 2475754826, %v42
    %v49 = vshrl.u32 2131351028, %v43
    %v50 = vor.u32 %v48, %v49
    %v51 = vshll.u32 2131351028, %v42
    %v52 = vshrl.u32 2102212464, %v43
    %v53 = vor.u32 %v51, %v52
    %v54 = vshll.u32 2102212464, %v42
    %v55 = vshrl.u32 920167782, %v43
    %v56 = vor.u32 %v54, %v55
    %v57 = vshll.u32 920167782, %v42
    %v58 = vshrl.u32 1326507024, %v43
    %v59 = vor.u32 %v57, %v58
    %vm60 = vcmp.lt.s32.totalorder %v41, 1
    %vm61 = vcmp.lt.s32.totalorder %v41, 2
    %vm62 = vcmp.lt.s32.totalorder %v41, 3
    %vm63 = vcmp.lt.s32.totalorder %v41, 4
    %v64 = vsel %vm60, %v44, %v47
    %v65 = vsel %vm63, %v53, 2102212464
    %v66 = vsel %vm62, %v50, %v65
    %v67 = vsel %vm61, %v64, %v66
    %v68 = vsel %vm60, %v47, %v50
    %v69 = vsel %vm63, %v56, 920167782
    %v70 = vsel %vm62, %v53, %v69
    %v71 = vsel %vm61, %v68, %v70
    %v72 = vsel %vm60, %v50, %v53
    %v73 = vsel %vm63, %v59, 1326507024
    %v74 = vsel %vm62, %v56, %v73
    %v75 = vsel %vm61, %v72, %v74
    %v76 = vshll.u32 %v36, 8
    %v77 = vand.u32 %v76, 65535
    %v78 = vshrl.u32 %v76, 16
    %v79 = vand.u32 %v75, 65535
    %v80 = vshrl.u32 %v75, 16
    %v81 = vmul.u32 %v77, %v79
    %v82 = vmul.u32 %v77, %v80
    %v83 = vmul.u32 %v78, %v79
    %v84 = vmul.u32 %v78, %v80
    %v85 = vshll.u32 %v82, 16
    %v86 = vshrl.u32 %v82, 16
    %v87 = vshll.u32 %v83, 16
    %v88 = vshrl.u32 %v83, 16
    %vm89 = vc.u32 %v81, %v85
    %v90 = vsel %vm89, 1, 0
    %v91 = vadd.s32 %v81, %v85
    %v92 = vadd.s32 %v84, %v90
    %vm93 = vc.u32 %v91, %v87
    %v94 = vsel %vm93, 1, 0
    %v95 = vadd.s32 %v91, %v87
    %v96 = vadd.s32 %v92, %v94
    %v97 = vadd.s32 %v96, %v86
    %v98 = vadd.s32 %v97, %v88
    %v99 = vand.u32 %v76, 65535
    %v100 = vshrl.u32 %v76, 16
    %v101 = vand.u32 %v71, 65535
    %v102 = vshrl.u32 %v71, 16
    %v103 = vmul.u32 %v99, %v101
    %v104 = vmul.u32 %v99, %v102
    %v105 = vmul.u32 %v100, %v101
    %v106 = vmul.u32 %v100, %v102
    %v107 = vshll.u32 %v104, 16
    %v108 = vshrl.u32 %v104, 16
    %v109 = vshll.u32 %v105, 16
    %v110 = vshrl.u32 %v105, 16
    %vm111 = vc.u32 %v103, %v107
    %v112 = vsel %vm111, 1, 0
    %v113 = vadd.s32 %v103, %v107
    %v114 = vadd.s32 %v106, %v112
    %vm115 = vc.u32 %v113, %v109
    %v116 = vsel %vm115, 1, 0
    %v117 = vadd.s32 %v113, %v109
    %v118 = vadd.s32 %v114, %v116
    %v119 = vadd.s32 %v118, %v108
    %v120 = vadd.s32 %v119, %v110
    %v121 = vmul.u32 %v76, %v67
    %v122 = vadd.s32 %v98, %v117
    %vm123 = vc.u32 %v98, %v117
    %v124 = vadd.s32 %v120, 1
    %v125 = vsel %vm123, %v124, %v120
    %v126 = vadd.s32 %v121, %v125
    %v127 = vadd.s32 %v126, 536870912
    %v128 = vshrl.u32 %v127, 30
    %v129 = vshll.u32 %v128, 30
    %v130 = vsub.s32 %v126, %v129
    %vm131 = vcmp.lt.s32.totalorder %v130, 0
    %v132 = vsub.s32 0, %v130
    %v133 = vsel %vm131, %v132, %v130
    %v134 = vclz %v133
    %v135 = vsub.s32 %v134, 2
    %vm136 = vcmp.gt.s32.totalorder 0, %v135
    %v137 = vsel %vm136, 0, %v135
    %v138 = vsub.s32 32, %v137
    %v139 = vshll.u32 %v130, %v137
    %v140 = vshrl.u32 %v122, %v138
    %v141 = vor.u32 %v139, %v140
    %v142 = vsub.s32 4294967266, %v137
    %v143 = vadd.s32 %v142, 127
    %v144 = vshll.u32 %v143, 23
    %v145 = vor.u32 4788187, %v144
    %v146 = vand.u32 2147483647, %v145
    %v148 = vcvt.s32.f32 %v141
    %v149 = vmul.f32 %v148, %v146
    %v150 = vxor.u32 %v149, 2147483648
    %v151 = vsel %vm30, %v150, %v149
    %v152 = vsub.s32 4, %v128
    %v153 = vsel %vm30, %v152, %v128
    %v154 = vsel %vm29, %v25, %v151
    %v155 = vsel %vm29, 0, %v153
    %v156 = vmul.f32 %v154, %v154
    %v157 = vmul.f32 %v156, -0.001358992
    %v158 = vadd.f32 %v157, 0.041655596
    %v159 = vmul.f32 %v156, %v158
    %v160 = vadd.f32 %v159, -0.4999988
    %v161 = vmul.f32 %v156, %v160
    %v162 = vadd.f32 1.0, %v161
    %v163 = vmul.f32 %v154, %v154
    %v164 = vmul.f32 %v163, -0.00019511016
    %v165 = vadd.f32 %v164, 0.008332121
    %v166 = vmul.f32 %v163, %v165
    %v167 = vadd.f32 %v166, -0.16666654
    %v168 = vmul.f32 %v163, %v167
    %v169 = vadd.f32 %v168, 1.0
    %v170 = vmul.f32 %v169, %v154
    %vm171 = vweird.f32 %v25
    %v172 = vadd.s32 %v155, 3
    %v173 = vand.u32 %v172, 3
    %vm174 = vcmp.lt.s32.totalorder %v173, 2
    %vm175 = vcmp.eq.s32.totalorder %v173, 0
    %v176 = vxor.u32 %v170, 2147483648
    %v177 = vsel %vm175, %v162, %v176
    %vm178 = vcmp.eq.s32.totalorder %v173, 2
    %v179 = vxor.u32 %v162, 2147483648
    %v180 = vsel %vm178, %v179, %v170
    %v181 = vsel %vm174, %v177, %v180
    %v182 = vsel %vm171, nan, %v181
    %v183 = vand.u32 2147483647, %v25
    %vm184 = vcmp.le.f32.partialorder %v183, 0.7853982
    %vm185 = vcmp.lt.s32.totalorder %v25, 0
    %v186 = vand.u32 %v25, 2139095040
    %v187 = vshrl.u32 %v186, 23
    %v188 = vsub.s32 %v187, 127
    %v189 = vand.u32 2147483647, %v25
    %v190 = vand.u32 %v189, 8388607
    %v191 = vor.u32 %v190, 8388608
    %v192 = vsub.s32 0, %v191
    %v193 = vadd.s32 %v188, 1
    %vm194 = vcmp.gt.s32.totalorder %v193, 0
    %v195 = vsel %vm194, %v193, 0
    %v196 = vshrl.u32 %v195, 5
    %v197 = vand.u32 %v195, 31
    %v198 = vsub.s32 32, %v197
    %v199 = vshrl.u32 683565275, %v198
    %v200 = vshll.u32 683565275, %v197
    %v201 = vshrl.u32 2475754826, %v198
    %v202 = vor.u32 %v200, %v201
    %v203 = vshll.u32 2475754826, %v197
    %v204 = vshrl.u32 2131351028, %v198
    %v205 = vor.u32 %v203, %v204
    %v206 = vshll.u32 2131351028, %v197
    %v207 = vshrl.u32 2102212464, %v198
    %v208 = vor.u32 %v206, %v207
    %v209 = vshll.u32 2102212464, %v197
    %v210 = vshrl.u32 920167782, %v198
    %v211 = vor.u32 %v209, %v210
    %v212 = vshll.u32 920167782, %v197
    %v213 = vshrl.u32 1326507024, %v198
    %v214 = vor.u32 %v212, %v213
    %vm215 = vcmp.lt.s32.totalorder %v196, 1
    %vm216 = vcmp.lt.s32.totalorder %v196, 2
    %vm217 = vcmp.lt.s32.totalorder %v196, 3
    %vm218 = vcmp.lt.s32.totalorder %v196, 4
    %v219 = vsel %vm215, %v199, %v202
    %v220 = vsel %vm218, %v208, 2102212464
    %v221 = vsel %vm217, %v205, %v220
    %v222 = vsel %vm216, %v219, %v221
    %v223 = vsel %vm215, %v202, %v205
    %v224 = vsel %vm218, %v211, 920167782
    %v225 = vsel %vm217, %v208, %v224
    %v226 = vsel %vm216, %v223, %v225
    %v227 = vsel %vm215, %v205, %v208
    %v228 = vsel %vm218, %v214, 1326507024
    %v229 = vsel %vm217, %v211, %v228
    %v230 = vsel %vm216, %v227, %v229
    %v231 = vshll.u32 %v191, 8
    %v232 = vand.u32 %v231, 65535
    %v233 = vshrl.u32 %v231, 16
    %v234 = vand.u32 %v230, 65535
    %v235 = vshrl.u32 %v230, 16
    %v236 = vmul.u32 %v232, %v234
    %v237 = vmul.u32 %v232, %v235
    %v238 = vmul.u32 %v233, %v234
    %v239 = vmul.u32 %v233, %v235
    %v240 = vshll.u32 %v237, 16
    %v241 = vshrl.u32 %v237, 16
    %v242 = vshll.u32 %v238, 16
    %v243 = vshrl.u32 %v238, 16
    %vm244 = vc.u32 %v236, %v240
    %v245 = vsel %vm244, 1, 0
    %v246 = vadd.s32 %v236, %v240
    %v247 = vadd.s32 %v239, %v245
    %vm248 = vc.u32 %v246, %v242
    %v249 = vsel %vm248, 1, 0
    %v250 = vadd.s32 %v246, %v242
    %v251 = vadd.s32 %v247, %v249
    %v252 = vadd.s32 %v251, %v241
    %v253 = vadd.s32 %v252, %v243
    %v254 = vand.u32 %v231, 65535
    %v255 = vshrl.u32 %v231, 16
    %v256 = vand.u32 %v226, 65535
    %v257 = vshrl.u32 %v226, 16
    %v258 = vmul.u32 %v254, %v256
    %v259 = vmul.u32 %v254, %v257
    %v260 = vmul.u32 %v255, %v256
    %v261 = vmul.u32 %v255, %v257
    %v262 = vshll.u32 %v259, 16
    %v263 = vshrl.u32 %v259, 16
    %v264 = vshll.u32 %v260, 16
    %v265 = vshrl.u32 %v260, 16
    %vm266 = vc.u32 %v258, %v262
    %v267 = vsel %vm266, 1, 0
    %v268 = vadd.s32 %v258, %v262
    %v269 = vadd.s32 %v261, %v267
    %vm270 = vc.u32 %v268, %v264
    %v271 = vsel %vm270, 1, 0
    %v272 = vadd.s32 %v268, %v264
    %v273 = vadd.s32 %v269, %v271
    %v274 = vadd.s32 %v273, %v263
    %v275 = vadd.s32 %v274, %v265
    %v276 = vmul.u32 %v231, %v222
    %v277 = vadd.s32 %v253, %v272
    %vm278 = vc.u32 %v253, %v272
    %v279 = vadd.s32 %v275, 1
    %v280 = vsel %vm278, %v279, %v275
    %v281 = vadd.s32 %v276, %v280
    %v282 = vadd.s32 %v281, 536870912
    %v283 = vshrl.u32 %v282, 30
    %v284 = vshll.u32 %v283, 30
    %v285 = vsub.s32 %v281, %v284
    %vm286 = vcmp.lt.s32.totalorder %v285, 0
    %v287 = vsub.s32 0, %v285
    %v288 = vsel %vm286, %v287, %v285
    %v289 = vclz %v288
    %v290 = vsub.s32 %v289, 2
    %vm291 = vcmp.gt.s32.totalorder 0, %v290
    %v292 = vsel %vm291, 0, %v290
    %v293 = vsub.s32 32, %v292
    %v294 = vshll.u32 %v285, %v292
    %v295 = vshrl.u32 %v277, %v293
    %v296 = vor.u32 %v294, %v295
    %v297 = vsub.s32 4294967266, %v292
    %v298 = vadd.s32 %v297, 127
    %v299 = vshll.u32 %v298, 23
    %v300 = vor.u32 4788187, %v299
    %v301 = vand.u32 2147483647, %v300
    %v303 = vcvt.s32.f32 %v296
    %v304 = vmul.f32 %v303, %v301
    %v305 = vxor.u32 %v304, 2147483648
    %v306 = vsel %vm185, %v305, %v304
    %v307 = vsub.s32 4, %v283
    %v308 = vsel %vm185, %v307, %v283
    %v309 = vsel %vm184, %v25, %v306
    %v310 = vsel %vm184, 0, %v308
    %v311 = vmul.f32 %v309, %v309
    %v312 = vmul.f32 %v311, -0.001358992
    %v313 = vadd.f32 %v312, 0.041655596
    %v314 = vmul.f32 %v311, %v313
    %v315 = vadd.f32 %v314, -0.4999988
    %v316 = vmul.f32 %v311, %v315
    %v317 = vadd.f32 1.0, %v316
    %v318 = vmul.f32 %v309, %v309
    %v319 = vmul.f32 %v318, -0.00019511016
    %v320 = vadd.f32 %v319, 0.008332121
    %v321 = vmul.f32 %v318, %v320
    %v322 = vadd.f32 %v321, -0.16666654
    %v323 = vmul.f32 %v318, %v322
    %v324 = vadd.f32 %v323, 1.0
    %v325 = vmul.f32 %v324, %v309
    %vm326 = vweird.f32 %v25
    %v327 = vand.u32 %v310, 3
    %vm328 = vcmp.lt.s32.totalorder %v327, 2
    %vm329 = vcmp.eq.s32.totalorder %v327, 0
    %v330 = vxor.u32 %v325, 2147483648
    %v331 = vsel %vm329, %v317, %v330
    %vm332 = vcmp.eq.s32.totalorder %v327, 2
    %v333 = vxor.u32 %v317, 2147483648
    %v334 = vsel %vm332, %v333, %v325
    %v335 = vsel %vm328, %v331, %v334
    %v336 = vsel %vm326, nan, %v335
    %v337 = vsel %vm27, 1, 0
    %v338 = vperm.slane %v337, 0
    %vm339 = vcmp.eq.s32.totalorder %v338, 1
    %v340 = vsel %vm339, %v182, %v336
    %vm341 = vcmask 261120
    %342 = vst.msk [vmem:[#allocation2] sm:$0xff] %vm341, %v340
    // Predicated region
    $region14: #{tpu_custom_call.1} parent=1 // pred_check
      _
    $region15: #{tpu_custom_call.1} parent=1 // pred_check_branch
      %344 = sbr.rel (0) target = $region17
    $region16: #{tpu_custom_call.1} parent=1 // pred_region
      %346 = vsyncadd [#allocation3], 0
      %s348 = sshll.u32 [#allocation2], 4
      %s349 = int_to_ptr.vmem [resolvable:$true] %s348
      %s350 = sshll.u32 %s3, 4
      %s351 = int_to_ptr.hbm [resolvable:$true] %s350
      %353 = dma.vmem_to_hbm [thread:$0]  %s349, 128, %s351, [#allocation3]
    $region17: #{tpu_custom_call.1} parent=1 // pred_fallthru
      _
    // Predicated region
    $region18: #{tpu_custom_call.1} parent=1 // pred_check
      _
    $region19: #{tpu_custom_call.1} parent=1 // pred_check_branch
      %355 = sbr.rel (0) target = $region21
    $region20: #{tpu_custom_call.1} parent=1 // pred_region
      %357 = dma.done [#allocation3], 128
    $region21: #{tpu_custom_call.1} parent=1 // pred_fallthru
      _
    %358 = vsyncpa [#allocation3], 1

</llo_original>
